<compile_context>
chip_gen: v6e
topology: v6e:2x2x1
jax: 0.10.0
libtpu: 0.0.40
codegen_flags: <defaults>
</compile_context>

<pallas_src>
import functools

import numpy as np
import jax
import jax.numpy as jnp
from jax.experimental import pallas as pl
from jax.experimental.pallas import tpu as pltpu


def _mae_loss_kernel(t_ref, p_ref, o_ref, *, normalize_length: bool, batch: int):
    # t_ref, p_ref: (1, B) in VMEM (any numeric dtype; cast to f32 in-kernel).
    # o_ref: (1, 1) f32 in SMEM.
    t = t_ref[...].astype(jnp.float32)          # (1, B)
    p = p_ref[...].astype(jnp.float32)          # (1, B)
    abs_err = jnp.abs(t - p)                    # (1, B)

    s_abs = jnp.sum(abs_err)                    # scalar, f32
    if normalize_length:
        s_t = jnp.sum(t)                        # independent second reduction
        o_ref[0, 0] = s_abs / s_t
    else:
        o_ref[0, 0] = s_abs / np.float32(batch)


def mae_loss(token_length, pre_token_length, normalize_length: bool = False):
    """Pallas implementation of the mae_loss module's forward pass."""
    assert token_length.shape == pre_token_length.shape
    batch = token_length.shape[0]

    # Free reshapes to 2-D (1, B) — no dtype cast, no extra HBM materialization.
    t2 = token_length.reshape(1, batch)
    p2 = pre_token_length.reshape(1, batch)

    kernel = functools.partial(
        _mae_loss_kernel, normalize_length=normalize_length, batch=batch
    )

    out = pl.pallas_call(
        kernel,
        out_shape=jax.ShapeDtypeStruct((1, 1), jnp.float32),
        in_specs=[
            pl.BlockSpec(memory_space=pltpu.MemorySpace.VMEM),
            pl.BlockSpec(memory_space=pltpu.MemorySpace.VMEM),
        ],
        out_specs=pl.BlockSpec(memory_space=pltpu.MemorySpace.SMEM),
    )(t2, p2)
    return out[0, 0]  # scalar loss


if __name__ == "__main__":
    key = jax.random.PRNGKey(0)
    k1, k2 = jax.random.split(key)
    B = 8
    # Token lengths are positive floats (as produced by the CIF predictor).
    token_length = jax.random.uniform(k1, (B,), jnp.float32, 1.0, 20.0)
    pre_token_length = token_length + jax.random.normal(k2, (B,)) * 0.5

    loss = mae_loss(token_length, pre_token_length, normalize_length=False)
    loss_norm = mae_loss(token_length, pre_token_length, normalize_length=True)
    jax.block_until_ready((loss, loss_norm))

    # Reference check in plain JAX (mirrors torch.nn.L1Loss(reduction='sum')).
    abs_sum = jnp.sum(jnp.abs(token_length - pre_token_length))
    ref = abs_sum / B
    ref_norm = abs_sum / jnp.sum(token_length)
    assert jnp.allclose(loss, ref, rtol=1e-6, atol=1e-6)
    assert jnp.allclose(loss_norm, ref_norm, rtol=1e-6, atol=1e-6)

    print("KERNEL_OK")
</pallas_src>

<mosaic_0001>
module attributes {stable_mosaic.version = 11 : i64} {
  func.func @_mae_loss_kernel(%arg0: memref<1x8xf32, #tpu.memory_space<vmem>>, %arg1: memref<1x8xf32, #tpu.memory_space<vmem>>, %arg2: memref<1x1xf32, #tpu.memory_space<smem>>) attributes {dimension_semantics = [], scalar_prefetch = 0 : i64, scratch_operands = 0 : i64, tpu.core_type = #tpu.core_type<tc>} {
    %c0 = arith.constant 0 : index
    %c0_0 = arith.constant 0 : index
    %0 = vector.load %arg0[%c0, %c0_0] : memref<1x8xf32, #tpu.memory_space<vmem>>, vector<1x8xf32>
    %c0_1 = arith.constant 0 : index
    %c0_2 = arith.constant 0 : index
    %1 = vector.load %arg1[%c0_1, %c0_2] : memref<1x8xf32, #tpu.memory_space<vmem>>, vector<1x8xf32>
    %2 = arith.subf %0, %1 : vector<1x8xf32>
    %3 = math.absf %2 : vector<1x8xf32>
    %4 = vector.shape_cast %3 : vector<1x8xf32> to vector<1x1x8xf32>
    %cst = arith.constant dense<0.000000e+00> : vector<1xf32>
    %5 = vector.multi_reduction <add>, %4, %cst [1, 2] : vector<1x1x8xf32> to vector<1xf32>
    %6 = vector.shape_cast %5 : vector<1xf32> to vector<1x1x1xf32>
    %7 = vector.extract %6[0, 0, 0] : f32 from vector<1x1x1xf32>
    %cst_3 = arith.constant 8.000000e+00 : f32
    %8 = arith.divf %7, %cst_3 : f32
    %c0_4 = arith.constant 0 : index
    %c0_5 = arith.constant 0 : index
    %9 = memref.load %arg2[%c0_4, %c0_5] : memref<1x1xf32, #tpu.memory_space<smem>>
    memref.store %8, %arg2[%c0_4, %c0_5] : memref<1x1xf32, #tpu.memory_space<smem>>
    return
  }
}

</mosaic_0001>

<llo_original>
// kernel: tpu_custom_call.1
$region0: #{tpu_custom_call.1}
  #allocation0 [shape = 'u32[]', space=smem, size = 0x4, offset = 0x4, fixed_abs, tag = 'smem constant byte address 0x4 - core index']
  #allocation1 [shape = 'u32[144,128]{1,0:T(1,128)}', space=vmem, size = 0x12000, scoped, tag = 'internal scratch']
  %s0 = inlined_call_operand.hbm [shape: f32[1,8], index: 0, kind: input, shape index: {}]
  %s1 = inlined_call_operand.vmem [shape: f32[1,8], index: 1, kind: input, shape index: {}]
  %s2 = inlined_call_operand.hbm [shape: f32[1,1], index: 2, kind: output, shape index: {}]
  %s3 = sld [smem:[#allocation0]]
  $region22: #{tpu_custom_call.1} parent=0
    _
  %s5 = ssub.s32 1, %s3
  %s6 = scalar_select 0, %s5, %s3
  $region1: #{tpu_custom_call.1} parent=0
    #allocation2 [shape = 'u8[512]{0}', space=vmem, size = 0x400, scoped, tag = 'input window, operand 0, single buffered']
    #allocation3 [shape = 's32[1]{0}', space=sflag, size = 0x4, scoped, tag = 'scoped memory for tpu_custom_call.1']
    #allocation4 [shape = 's32[1]{0}', space=sflag, size = 0x4, scoped, tag = 'scoped memory for tpu_custom_call.1']
    #allocation5 [shape = 'u8[512]{0}', space=smem, size = 0x200, scoped, tag = 'output window, operand 0, single buffered']
    %7 = vsyncpa [#allocation3], 0
    %8 = vsyncpa [#allocation4], 0
    // Predicated region
    $region2: #{tpu_custom_call.1} parent=1 // pred_check
      _
    $region3: #{tpu_custom_call.1} parent=1 // pred_check_branch
      %10 = sbr.rel (0) target = $region5
    $region4: #{tpu_custom_call.1} parent=1 // pred_region
      %s12 = ssub.s32 16, 16
      %13 = vsyncadd [#allocation3], %s12
      %s15 = sshll.u32 [#allocation2], 4
      %s16 = int_to_ptr.vmem [resolvable:$true] %s15
      %18 = dma.hbm_to_vmem [thread:$0]  %s0, 16, %s16, [#allocation3]
    $region5: #{tpu_custom_call.1} parent=1 // pred_fallthru
      _
    // Predicated region
    $region6: #{tpu_custom_call.1} parent=1 // pred_check
      _
    $region7: #{tpu_custom_call.1} parent=1 // pred_check_branch
      %20 = sbr.rel (0) target = $region9
    $region8: #{tpu_custom_call.1} parent=1 // pred_region
      _
    $region9: #{tpu_custom_call.1} parent=1 // pred_fallthru
      _
    // Predicated region
    $region10: #{tpu_custom_call.1} parent=1 // pred_check
      _
    $region11: #{tpu_custom_call.1} parent=1 // pred_check_branch
      %22 = sbr.rel (0) target = $region13
    $region12: #{tpu_custom_call.1} parent=1 // pred_region
      %23 = dma.done [#allocation3], 16
    $region13: #{tpu_custom_call.1} parent=1 // pred_fallthru
      _
    %v24 = vld [vmem:[#allocation2] sm:$0x1]
    %v25 = vld [vmem:[%s1] sm:$0x1]
    %v26 = vsub.f32 %v24, %v25
    %v27 = vand.u32 2147483647, %v26
    %vm28 = vcmask 57344
    %v29 = vsel %vm28, %v27, 0.0
    %30 = vadd.xlane.f32.xlu0 %v29
    %v31 = vpop.xlane.xlu0 %30
    %v32 = vrot.slane %v31, 4
    %v33 = vadd.f32 %v31, %v32
    %v34 = vrot.slane %v33, 2
    %v35 = vadd.f32 %v33, %v34
    %v36 = vrot.slane %v35, 1
    %v37 = vadd.f32 %v35, %v36
    %s38 = vtos %v37
    %v39 = vrcp.pop 8.0
    %s40 = vtos %v39
    %s41 = smul.f32 %s38, %s40
    %s42 = scalar_lea.smem [#allocation5], 0
    %43 = sst [smem:[%s42]] %s41
    // Predicated region
    $region14: #{tpu_custom_call.1} parent=1 // pred_check
      _
    $region15: #{tpu_custom_call.1} parent=1 // pred_check_branch
      %45 = sbr.rel (0) target = $region17
    $region16: #{tpu_custom_call.1} parent=1 // pred_region
      %s47 = ssub.s32 16, 16
      %48 = vsyncadd [#allocation4], %s47
      %51 = dma.smem_to_hbm [#allocation5], 16, %s2, [#allocation4]
    $region17: #{tpu_custom_call.1} parent=1 // pred_fallthru
      _
    // Predicated region
    $region18: #{tpu_custom_call.1} parent=1 // pred_check
      _
    $region19: #{tpu_custom_call.1} parent=1 // pred_check_branch
      %53 = sbr.rel (0) target = $region21
    $region20: #{tpu_custom_call.1} parent=1 // pred_region
      %54 = dma.done [#allocation4], 16
    $region21: #{tpu_custom_call.1} parent=1 // pred_fallthru
      _
    %55 = sfence
    %56 = vsyncpa [#allocation3], 1
    %57 = vsyncpa [#allocation4], 1

</llo_original>
